<compile_context>
chip_gen: v5e
topology: v5e:2x2
jax: 0.10.0
libtpu: 0.0.40
codegen_flags: <defaults>
</compile_context>

<pallas_src>
import functools

import jax
import jax.numpy as jnp
from jax.experimental import pallas as pl
from jax.experimental.pallas import tpu as pltpu

PAD = 0                 # padding_idx for the embedding
TILE_N_TARGET = 1024    # preferred vocab tile width (lane multiple of 128)


def _round_up(x, m):
    return (x + m - 1) // m * m


def _vmem_budget_cap():
    """~75% of physical VMEM: ~48 MiB on v7x (64 MiB), ~96 MiB on v5e/v6e (128 MiB)."""
    try:
        phys = int(pltpu.get_tpu_info().vmem_capacity_bytes)
    except Exception:
        phys = 128 << 20
    return max(16 << 20, (phys * 3) // 4)


# ----------------------------------------------------------------------------
# Kernels
# ----------------------------------------------------------------------------
def _gru_kernel(xh_ref, h_ref, wg_ref, bg_ref, h_out_ref, h_bf16_ref):
    """Single fused GRU step: one MXU call for all four gate pre-activations."""
    hp = h_ref.shape[1]
    # Fused gate pre-activations: [r_pre | z_pre | i_n | h_n], each hp wide.
    # TODO(synk): for Hp >= ~1024 split into four hp-wide dots so the (Bp,4Hp)
    # fp32 gate tensor does not blow the vreg file.
    g = jnp.dot(xh_ref[...], wg_ref[...],
                preferred_element_type=jnp.float32) + bg_ref[...]
    r = jax.nn.sigmoid(g[:, 0:hp])
    z = jax.nn.sigmoid(g[:, hp:2 * hp])
    n = jnp.tanh(g[:, 2 * hp:3 * hp] + r * g[:, 3 * hp:4 * hp])
    h_new = (1.0 - z) * n + z * h_ref[...]          # fp32 blend (PyTorch semantics)
    h_out_ref[...] = h_new
    h_bf16_ref[...] = h_new.astype(jnp.bfloat16)


def _proj_kernel(h_ref, wout_ref, bout_ref, logits_ref):
    """One vocab tile of the output projection (bf16 x bf16 -> fp32 acc -> bf16)."""
    logits_ref[...] = (
        jnp.dot(h_ref[...], wout_ref[...], preferred_element_type=jnp.float32)
        + bout_ref[...]).astype(logits_ref.dtype)


# ----------------------------------------------------------------------------
# Fused decode step
# ----------------------------------------------------------------------------
@functools.partial(jax.jit, static_argnames=("tile_n",))
def decoder_step_pallas(xh, h, wg, bg, wout_t, bout, *, tile_n):
    """xh: (Bp, 2Hp) bf16, h: (Bp, Hp) f32, wg: (2Hp, 4Hp) bf16, bg: (1, 4Hp) f32,
    wout_t: (Hp, Vp) bf16, bout: (1, Vp) f32.
    Returns (h_new (Bp, Hp) f32, logits (Bp, Vp) bf16)."""
    bp, two_hp = xh.shape
    hp = two_hp // 2
    vp = wout_t.shape[1]
    n_tiles = vp // tile_n
    cap = _vmem_budget_cap()

    # ---- (1) GRU step: tiny, ungridded, everything resident in VMEM ----------
    gru_bytes = (xh.size * 2 + h.size * 4 + wg.size * 2 + bg.size * 4
                 + bp * hp * 4 + bp * hp * 2)
    gru_cost = pl.CostEstimate(
        flops=2 * bp * (2 * hp) * (4 * hp),
        transcendentals=3 * bp * hp,
        bytes_accessed=gru_bytes,
    )
    h_new, h_bf16 = pl.pallas_call(
        _gru_kernel,
        out_shape=(jax.ShapeDtypeStruct((bp, hp), jnp.float32),
                   jax.ShapeDtypeStruct((bp, hp), jnp.bfloat16)),
        in_specs=[pl.BlockSpec(memory_space=pltpu.MemorySpace.VMEM)
                  for _ in range(4)],
        out_specs=(pl.BlockSpec(memory_space=pltpu.MemorySpace.VMEM),
                   pl.BlockSpec(memory_space=pltpu.MemorySpace.VMEM)),
        compiler_params=pltpu.CompilerParams(
            vmem_limit_bytes=int(min(cap, max(16 << 20, 2 * gru_bytes))),
        ),
        cost_estimate=gru_cost,
    )(xh, h, wg, bg)

    # ---- (2) Vocab projection: streamed W_out^T, parallel over vocab tiles ---
    wout_buf = min(max(n_tiles, 1), 3)          # deeper pipeline once >= 3 tiles
    resident = bp * hp * 2                       # h_bf16, single buffer
    streamed = (wout_buf * hp * tile_n * 2       # W_out^T tiles
                + 2 * tile_n * 4                 # bout tiles (double-buffered)
                + 2 * bp * tile_n * 2)           # logits tiles (double-buffered)
    vmem_limit = int(min(cap, max(16 << 20, 2 * resident + streamed + (2 << 20))))

    proj_cost = pl.CostEstimate(
        flops=2 * bp * hp * vp,
        transcendentals=0,
        bytes_accessed=hp * vp * 2 + vp * 4 + bp * hp * 2 + bp * vp * 2,
    )

    grid_spec = pltpu.PrefetchScalarGridSpec(
        num_scalar_prefetch=0,
        grid=(n_tiles,),
        in_specs=[
            # resident hidden state: no double buffering needed
            pl.BlockSpec((bp, hp), lambda j: (0, 0),
                         pipeline_mode=pl.Buffered(1)),
            # streamed W_out^T vocab tile
            pl.BlockSpec((hp, tile_n), lambda j: (0, j),
                         pipeline_mode=pl.Buffered(wout_buf)),
            # streamed b_out vocab tile (tiny)
            pl.BlockSpec((1, tile_n), lambda j: (0, j)),
        ],
        out_specs=pl.BlockSpec((bp, tile_n), lambda j: (0, j)),
    )

    logits = pl.pallas_call(
        _proj_kernel,
        out_shape=jax.ShapeDtypeStruct((bp, vp), jnp.bfloat16),
        grid_spec=grid_spec,
        compiler_params=pltpu.CompilerParams(
            # No cross-tile carry anymore, so the vocab axis can be split
            # across TensorCores (2x on v7x, no-op on single-TC v5e/v6e).
            dimension_semantics=("parallel",),
            vmem_limit_bytes=vmem_limit,
        ),
        cost_estimate=proj_cost,
    )(h_bf16, wout_t, bout)

    return h_new, logits


# ----------------------------------------------------------------------------
# Module wrapper
# ----------------------------------------------------------------------------
class DecoderPallas:
    """JAX/Pallas port of the PyTorch Decoder module (single decode step)."""

    def __init__(self, hidden_size, output_size, key, tile_n=None):
        self.hidden_size = hidden_size
        self.output_size = output_size
        H, V = hidden_size, output_size
        Hp = _round_up(H, 128)
        Vp128 = _round_up(V, 128)
        if tile_n is None:
            # Single tile for small vocabs; large fixed tiles (vocab padded up
            # to a tile multiple) for big vocabs -- no divisibility collapse.
            tile_n = Vp128 if Vp128 <= TILE_N_TARGET else TILE_N_TARGET
        tile_n = _round_up(tile_n, 128)
        Vp = _round_up(Vp128, tile_n)
        self.Hp, self.Vp, self.tile_n = Hp, Vp, tile_n

        k_emb, k_wih, k_whh, k_bih, k_bhh, k_wo, k_bo = jax.random.split(key, 7)
        scale = 1.0 / jnp.sqrt(H)

        # --- fp32 "PyTorch" parameters (kept for the reference check) ---------
        emb = jax.random.normal(k_emb, (V, H), jnp.float32) * 0.1
        self.embedding_f32 = emb.at[PAD].set(0.0)                 # padding row = 0
        self.w_ih_f32 = jax.random.uniform(k_wih, (3 * H, H), jnp.float32, -scale, scale)
        self.w_hh_f32 = jax.random.uniform(k_whh, (3 * H, H), jnp.float32, -scale, scale)
        self.b_ih_f32 = jax.random.uniform(k_bih, (3 * H,), jnp.float32, -scale, scale)
        self.b_hh_f32 = jax.random.uniform(k_bhh, (3 * H,), jnp.float32, -scale, scale)
        self.w_out_f32 = jax.random.uniform(k_wo, (V, H), jnp.float32, -scale, scale)
        self.b_out_f32 = jax.random.uniform(k_bo, (V,), jnp.float32, -scale, scale)

        # --- padded / fused / bf16 kernel parameters ---------------------------
        emb_p = jnp.zeros((V, Hp), jnp.float32).at[:, :H].set(self.embedding_f32)
        self.emb_p = emb_p.astype(jnp.bfloat16)

        # Fused gate matrix Wg (2Hp, 4Hp): rows [0:Hp] <- x, rows [Hp:2Hp] <- h.
        # Column blocks: [r (x+h) | z (x+h) | i_n (x only) | h_n (h only)].
        wih_t = self.w_ih_f32.T        # (H, 3H): [r | z | n]
        whh_t = self.w_hh_f32.T
        wg = jnp.zeros((2 * Hp, 4 * Hp), jnp.float32)
        wg = wg.at[0:H, 0:H].set(wih_t[:, 0:H])                           # x -> r
        wg = wg.at[Hp:Hp + H, 0:H].set(whh_t[:, 0:H])                     # h -> r
        wg = wg.at[0:H, Hp:Hp + H].set(wih_t[:, H:2 * H])                 # x -> z
        wg = wg.at[Hp:Hp + H, Hp:Hp + H].set(whh_t[:, H:2 * H])           # h -> z
        wg = wg.at[0:H, 2 * Hp:2 * Hp + H].set(wih_t[:, 2 * H:3 * H])     # x -> i_n
        wg = wg.at[Hp:Hp + H, 3 * Hp:3 * Hp + H].set(whh_t[:, 2 * H:3 * H])  # h -> h_n
        self.wg = wg.astype(jnp.bfloat16)

        bg = jnp.zeros((1, 4 * Hp), jnp.float32)
        bg = bg.at[0, 0:H].set(self.b_ih_f32[0:H] + self.b_hh_f32[0:H])
        bg = bg.at[0, Hp:Hp + H].set(self.b_ih_f32[H:2 * H] + self.b_hh_f32[H:2 * H])
        bg = bg.at[0, 2 * Hp:2 * Hp + H].set(self.b_ih_f32[2 * H:3 * H])
        bg = bg.at[0, 3 * Hp:3 * Hp + H].set(self.b_hh_f32[2 * H:3 * H])
        self.bg = bg                                                      # fp32

        wout_t = jnp.zeros((Hp, Vp), jnp.float32).at[:H, :V].set(self.w_out_f32.T)
        self.wout_t = wout_t.astype(jnp.bfloat16)
        self.bout = jnp.zeros((1, Vp), jnp.float32).at[0, :V].set(self.b_out_f32)

    def __call__(self, seqs, hidden):
        """
        seqs   : int32 (1, B)      single decoding step of token ids
        hidden : float32 (1, B, H) previous hidden state
        returns (output (B, V), hidden (1, B, H))  -- matches output.squeeze(0)
        """
        H, Hp, V = self.hidden_size, self.Hp, self.output_size
        tokens = seqs[0]
        B = tokens.shape[0]
        Bp = _round_up(B, 8)

        # TODO(synk): move the embedding gather in-kernel via scalar-prefetched
        # token ids + pl.Element row indexing once B*H is large enough to matter.
        x = jnp.take(self.emb_p, tokens, axis=0)                      # (B, Hp) bf16
        if Bp != B:
            x = jnp.zeros((Bp, Hp), jnp.bfloat16).at[:B].set(x)
        h_p = jnp.zeros((Bp, Hp), jnp.float32).at[:B, :H].set(
            hidden[0].astype(jnp.float32))
        xh = jnp.concatenate([x, h_p.astype(jnp.bfloat16)], axis=1)   # (Bp, 2Hp)

        h_new_p, logits_p = decoder_step_pallas(
            xh, h_p, self.wg, self.bg, self.wout_t, self.bout, tile_n=self.tile_n)
        return (logits_p[:B, :V].astype(jnp.float32),
                h_new_p[None, :B, :H])


# ----------------------------------------------------------------------------
# Pure-JAX reference (same math: bf16 matmul inputs, fp32 accumulation/blend)
# ----------------------------------------------------------------------------
def _reference_forward(dec, seqs, hidden):
    H = dec.hidden_size

    def bf(a):
        return a.astype(jnp.bfloat16).astype(jnp.float32)

    x = bf(jnp.take(dec.embedding_f32, seqs[0], axis=0))
    h = hidden[0].astype(jnp.float32)
    h_b = bf(h)
    gi = x @ bf(dec.w_ih_f32).T + dec.b_ih_f32
    gh = h_b @ bf(dec.w_hh_f32).T + dec.b_hh_f32
    r = jax.nn.sigmoid(gi[:, :H] + gh[:, :H])
    z = jax.nn.sigmoid(gi[:, H:2 * H] + gh[:, H:2 * H])
    n = jnp.tanh(gi[:, 2 * H:] + r * gh[:, 2 * H:])
    h_new = (1.0 - z) * n + z * h
    logits = bf(h_new) @ bf(dec.w_out_f32).T + dec.b_out_f32
    return logits, h_new[None]


if __name__ == "__main__":
    hidden_size = 32
    output_size = 300   # vocab (padded to 384 internally)
    batch_size = 8

    key = jax.random.PRNGKey(0)
    k_params, k_seq, k_hid = jax.random.split(key, 3)

    seqs = jax.random.randint(k_seq, (1, batch_size), 0, output_size, dtype=jnp.int32)
    hidden = jax.random.normal(k_hid, (1, batch_size, hidden_size), jnp.float32)

    # Default (auto) tiling: one 384-wide vocab tile here, 1024-wide for big vocabs.
    decoder = DecoderPallas(hidden_size, output_size, k_params)
    output, new_hidden = decoder(seqs, hidden)
    output = jax.block_until_ready(output)
    new_hidden = jax.block_until_ready(new_hidden)

    assert output.shape == (batch_size, output_size)
    assert new_hidden.shape == (1, batch_size, hidden_size)

    ref_out, ref_hid = _reference_forward(decoder, seqs, hidden)
    assert jnp.allclose(output, ref_out, atol=2e-2, rtol=2e-2), "logits mismatch vs reference"
    assert jnp.allclose(new_hidden, ref_hid, atol=1e-2, rtol=1e-2), "hidden mismatch vs reference"

    # Also exercise the multi-tile / parallel-vocab-axis path (3 tiles of 128).
    decoder_mt = DecoderPallas(hidden_size, output_size, k_params, tile_n=128)
    out_mt, hid_mt = decoder_mt(seqs, hidden)
    out_mt = jax.block_until_ready(out_mt)
    hid_mt = jax.block_until_ready(hid_mt)
    assert jnp.allclose(out_mt, ref_out, atol=2e-2, rtol=2e-2), "multi-tile logits mismatch"
    assert jnp.allclose(hid_mt, ref_hid, atol=1e-2, rtol=1e-2), "multi-tile hidden mismatch"

    print("KERNEL_OK")
</pallas_src>

<mosaic_0001>
module attributes {stable_mosaic.version = 11 : i64} {
  func.func @_proj_kernel(%arg0: i32, %arg1: memref<8x128xbf16, #tpu.memory_space<vmem>>, %arg2: memref<128x384xbf16, #tpu.memory_space<vmem>>, %arg3: memref<1x384xf32, #tpu.memory_space<vmem>>, %arg4: memref<8x384xbf16, #tpu.memory_space<vmem>>) attributes {dimension_semantics = [#tpu.dimension_semantics<parallel>], iteration_bounds = array<i64: 1>, scalar_prefetch = 0 : i64, scratch_operands = 0 : i64, tpu.core_type = #tpu.core_type<tc>, window_params = [{pipeline_mode = #tpu.pipeline_mode<synchronous>, transform_indices = @transform_0, window_bounds = array<i64: 8, 128>}, {pipeline_mode = #tpu.pipeline_mode<synchronous>, transform_indices = @transform_1, window_bounds = array<i64: 128, 384>}, {transform_indices = @transform_2, window_bounds = array<i64: 1, 384>}, {transform_indices = @transform_3, window_bounds = array<i64: 8, 384>}]} {
    %c0 = arith.constant 0 : index
    %c0_0 = arith.constant 0 : index
    %0 = vector.load %arg1[%c0, %c0_0] : memref<8x128xbf16, #tpu.memory_space<vmem>>, vector<8x128xbf16>
    %c0_1 = arith.constant 0 : index
    %c0_2 = arith.constant 0 : index
    %1 = vector.load %arg2[%c0_1, %c0_2] : memref<128x384xbf16, #tpu.memory_space<vmem>>, vector<128x384xbf16>
    %cst = arith.constant dense<0.000000e+00> : vector<8x384xf32>
    %2 = tpu.matmul %0, %1, %cst {dimension_numbers = #tpu.dot_dimension_numbers<[1], [0], [0], [1], [0, 0, 1, 1], [], []>} : vector<8x128xbf16>, vector<128x384xbf16>, vector<8x384xf32> -> vector<8x384xf32>
    %c0_3 = arith.constant 0 : index
    %c0_4 = arith.constant 0 : index
    %3 = vector.load %arg3[%c0_3, %c0_4] : memref<1x384xf32, #tpu.memory_space<vmem>>, vector<1x384xf32>
    %4 = vector.broadcast %3 : vector<1x384xf32> to vector<8x384xf32>
    %5 = arith.addf %2, %4 : vector<8x384xf32>
    %6 = arith.truncf %5 : vector<8x384xf32> to vector<8x384xbf16>
    %c0_5 = arith.constant 0 : index
    %c0_6 = arith.constant 0 : index
    %7 = vector.load %arg4[%c0_5, %c0_6] : memref<8x384xbf16, #tpu.memory_space<vmem>>, vector<8x384xbf16>
    tpu.vector_store %arg4[%c0_5, %c0_6], %6 {strides = array<i32>} : memref<8x384xbf16, #tpu.memory_space<vmem>>, vector<8x384xbf16>,
    return
  }
  func.func @transform_0(%arg0: i32) -> (i32, i32) {
    %c0_i32 = arith.constant 0 : i32
    %c0_i32_0 = arith.constant 0 : i32
    %c0_i32_1 = arith.constant 0 : i32
    return %c0_i32, %c0_i32_0 : i32, i32
  }
  func.func @transform_1(%arg0: i32) -> (i32, i32) {
    %c0_i32 = arith.constant 0 : i32
    %c0_i32_0 = arith.constant 0 : i32
    return %c0_i32, %arg0 : i32, i32
  }
  func.func @transform_2(%arg0: i32) -> (i32, i32) {
    %c0_i32 = arith.constant 0 : i32
    %c0_i32_0 = arith.constant 0 : i32
    return %c0_i32, %arg0 : i32, i32
  }
  func.func @transform_3(%arg0: i32) -> (i32, i32) {
    %c0_i32 = arith.constant 0 : i32
    %c0_i32_0 = arith.constant 0 : i32
    return %c0_i32, %arg0 : i32, i32
  }
}

module attributes {stable_mosaic.version = 11 : i64} {
  func.func @_gru_kernel(%arg0: memref<8x256xbf16, #tpu.memory_space<vmem>>, %arg1: memref<8x128xf32, #tpu.memory_space<vmem>>, %arg2: memref<256x512xbf16, #tpu.memory_space<vmem>>, %arg3: memref<1x512xf32, #tpu.memory_space<vmem>>, %arg4: memref<8x128xf32, #tpu.memory_space<vmem>>, %arg5: memref<8x128xbf16, #tpu.memory_space<vmem>>) attributes {dimension_semantics = [], scalar_prefetch = 0 : i64, scratch_operands = 0 : i64, tpu.core_type = #tpu.core_type<tc>} {
    %c0 = arith.constant 0 : index
    %c0_0 = arith.constant 0 : index
    %0 = vector.load %arg0[%c0, %c0_0] : memref<8x256xbf16, #tpu.memory_space<vmem>>, vector<8x256xbf16>
    %c0_1 = arith.constant 0 : index
    %c0_2 = arith.constant 0 : index
    %1 = vector.load %arg2[%c0_1, %c0_2] : memref<256x512xbf16, #tpu.memory_space<vmem>>, vector<256x512xbf16>
    %cst = arith.constant dense<0.000000e+00> : vector<8x512xf32>
    %2 = tpu.matmul %0, %1, %cst {dimension_numbers = #tpu.dot_dimension_numbers<[1], [0], [0], [1], [0, 0, 1, 1], [], []>} : vector<8x256xbf16>, vector<256x512xbf16>, vector<8x512xf32> -> vector<8x512xf32>
    %c0_3 = arith.constant 0 : index
    %c0_4 = arith.constant 0 : index
    %3 = vector.load %arg3[%c0_3, %c0_4] : memref<1x512xf32, #tpu.memory_space<vmem>>, vector<1x512xf32>
    %4 = vector.broadcast %3 : vector<1x512xf32> to vector<8x512xf32>
    %5 = arith.addf %2, %4 : vector<8x512xf32>
    %6 = vector.extract_strided_slice %5 {offsets = [0, 0], sizes = [8, 128], strides = [1, 1]} : vector<8x512xf32> to vector<8x128xf32>
    %7 = arith.negf %6 : vector<8x128xf32>
    %8 = math.exp %7 : vector<8x128xf32>
    %cst_5 = arith.constant 1.000000e+00 : f32
    %9 = vector.broadcast %cst_5 : f32 to vector<8x128xf32>
    %10 = arith.addf %9, %8 : vector<8x128xf32>
    %11 = arith.divf %9, %10 : vector<8x128xf32>
    %12 = vector.extract_strided_slice %5 {offsets = [0, 128], sizes = [8, 128], strides = [1, 1]} : vector<8x512xf32> to vector<8x128xf32>
    %13 = arith.negf %12 : vector<8x128xf32>
    %14 = math.exp %13 : vector<8x128xf32>
    %cst_6 = arith.constant 1.000000e+00 : f32
    %15 = vector.broadcast %cst_6 : f32 to vector<8x128xf32>
    %16 = arith.addf %15, %14 : vector<8x128xf32>
    %17 = arith.divf %15, %16 : vector<8x128xf32>
    %18 = vector.extract_strided_slice %5 {offsets = [0, 256], sizes = [8, 128], strides = [1, 1]} : vector<8x512xf32> to vector<8x128xf32>
    %19 = vector.extract_strided_slice %5 {offsets = [0, 384], sizes = [8, 128], strides = [1, 1]} : vector<8x512xf32> to vector<8x128xf32>
    %20 = arith.mulf %11, %19 : vector<8x128xf32>
    %21 = arith.addf %18, %20 : vector<8x128xf32>
    %22 = math.tanh %21 : vector<8x128xf32>
    %cst_7 = arith.constant 1.000000e+00 : f32
    %23 = vector.broadcast %cst_7 : f32 to vector<8x128xf32>
    %24 = arith.subf %23, %17 : vector<8x128xf32>
    %25 = arith.mulf %24, %22 : vector<8x128xf32>
    %c0_8 = arith.constant 0 : index
    %c0_9 = arith.constant 0 : index
    %26 = vector.load %arg1[%c0_8, %c0_9] : memref<8x128xf32, #tpu.memory_space<vmem>>, vector<8x128xf32>
    %27 = arith.mulf %17, %26 : vector<8x128xf32>
    %28 = arith.addf %25, %27 : vector<8x128xf32>
    %c0_10 = arith.constant 0 : index
    %c0_11 = arith.constant 0 : index
    %29 = vector.load %arg4[%c0_10, %c0_11] : memref<8x128xf32, #tpu.memory_space<vmem>>, vector<8x128xf32>
    tpu.vector_store %arg4[%c0_10, %c0_11], %28 {strides = array<i32>} : memref<8x128xf32, #tpu.memory_space<vmem>>, vector<8x128xf32>,
    %30 = arith.truncf %28 : vector<8x128xf32> to vector<8x128xbf16>
    %c0_12 = arith.constant 0 : index
    %c0_13 = arith.constant 0 : index
    %31 = vector.load %arg5[%c0_12, %c0_13] : memref<8x128xbf16, #tpu.memory_space<vmem>>, vector<8x128xbf16>
    tpu.vector_store %arg5[%c0_12, %c0_13], %30 {strides = array<i32>} : memref<8x128xbf16, #tpu.memory_space<vmem>>, vector<8x128xbf16>,
    return
  }
}

</mosaic_0001>

<llo_original>
// kernel: decoder_step_pallas.3
$region0: #{decoder_step_pallas.3}
  #allocation0 [shape = 'u32[]', space=smem, size = 0x4, offset = 0x4, fixed_abs, tag = 'smem constant byte address 0x4 - core index']
  #allocation1 [shape = 'u32[72,128]{1,0:T(1,128)}', space=vmem, size = 0x9000, scoped, tag = 'internal scratch']
  %s0 = inlined_call_operand.vmem [shape: bf16[8,128], index: 0, kind: input, shape index: {}]
  %s1 = inlined_call_operand.vmem [shape: bf16[128,384], index: 1, kind: input, shape index: {}]
  %s2 = inlined_call_operand.vmem [shape: f32[1,384], index: 2, kind: input, shape index: {}]
  %s3 = inlined_call_operand.hbm [shape: bf16[8,384], index: 3, kind: output, shape index: {}]
  %s4 = sld [smem:[#allocation0]]
  $region22: #{decoder_step_pallas.3} parent=0
    _
  %s6 = ssub.s32 1, %s4
  %s7 = scalar_select 0, %s6, %s4
  $region1: #{decoder_step_pallas.3} parent=0
    #allocation2 [shape = 'u8[6144]{0}', space=vmem, size = 0x1800, scoped, tag = 'output window, operand 0, single buffered']
    #allocation3 [shape = 's32[1]{0}', space=sflag, size = 0x4, scoped, tag = 'scoped memory for decoder_step_pallas.3']
    %8 = vsyncpa [#allocation3], 0
    // Predicated region
    $region2: #{decoder_step_pallas.3} parent=1 // pred_check
      _
    $region3: #{decoder_step_pallas.3} parent=1 // pred_check_branch
      %10 = sbr.rel (0) target = $region5
    $region4: #{decoder_step_pallas.3} parent=1 // pred_region
      _
    $region5: #{decoder_step_pallas.3} parent=1 // pred_fallthru
      _
    // Predicated region
    $region6: #{decoder_step_pallas.3} parent=1 // pred_check
      _
    $region7: #{decoder_step_pallas.3} parent=1 // pred_check_branch
      %12 = sbr.rel (0) target = $region9
    $region8: #{decoder_step_pallas.3} parent=1 // pred_region
      _
    $region9: #{decoder_step_pallas.3} parent=1 // pred_fallthru
      _
    // Predicated region
    $region10: #{decoder_step_pallas.3} parent=1 // pred_check
      _
    $region11: #{decoder_step_pallas.3} parent=1 // pred_check_branch
      %14 = sbr.rel (0) target = $region13
    $region12: #{decoder_step_pallas.3} parent=1 // pred_region
      _
    $region13: #{decoder_step_pallas.3} parent=1 // pred_fallthru
      _
    %v15 = vld [vmem:[%s0] sm:$0xf]
    %v16 = vld [vmem:[%s1] sm:$0xff]
    %v17 = vld [vmem:[%s1 + $0x8] sm:$0xf]
    %v18 = vld [vmem:[%s1 + $0xc] sm:$0xff]
    %v19 = vld [vmem:[%s1 + $0x14] sm:$0xf]
    %v20 = vld [vmem:[%s1 + $0x18] sm:$0xff]
    %v21 = vld [vmem:[%s1 + $0x20] sm:$0xf]
    %v22 = vld [vmem:[%s1 + $0x24] sm:$0xff]
    %v23 = vld [vmem:[%s1 + $0x2c] sm:$0xf]
    %v24 = vld [vmem:[%s1 + $0x30] sm:$0xff]
    %v25 = vld [vmem:[%s1 + $0x38] sm:$0xf]
    %v26 = vld [vmem:[%s1 + $0x3c] sm:$0xff]
    %v27 = vld [vmem:[%s1 + $0x44] sm:$0xf]
    %v28 = vld [vmem:[%s1 + $0x48] sm:$0xff]
    %v29 = vld [vmem:[%s1 + $0x50] sm:$0xf]
    %v30 = vld [vmem:[%s1 + $0x54] sm:$0xff]
    %v31 = vld [vmem:[%s1 + $0x5c] sm:$0xf]
    %v32 = vld [vmem:[%s1 + $0x60] sm:$0xff]
    %v33 = vld [vmem:[%s1 + $0x68] sm:$0xf]
    %v34 = vld [vmem:[%s1 + $0x6c] sm:$0xff]
    %v35 = vld [vmem:[%s1 + $0x74] sm:$0xf]
    %v36 = vld [vmem:[%s1 + $0x78] sm:$0xff]
    %v37 = vld [vmem:[%s1 + $0x80] sm:$0xf]
    %v38 = vld [vmem:[%s1 + $0x84] sm:$0xff]
    %v39 = vld [vmem:[%s1 + $0x8c] sm:$0xf]
    %v40 = vld [vmem:[%s1 + $0x90] sm:$0xff]
    %v41 = vld [vmem:[%s1 + $0x98] sm:$0xf]
    %v42 = vld [vmem:[%s1 + $0x9c] sm:$0xff]
    %v43 = vld [vmem:[%s1 + $0xa4] sm:$0xf]
    %v44 = vld [vmem:[%s1 + $0xa8] sm:$0xff]
    %v45 = vld [vmem:[%s1 + $0xb0] sm:$0xf]
    %v46 = vld [vmem:[%s1 + $0xb4] sm:$0xff]
    %v47 = vld [vmem:[%s1 + $0xbc] sm:$0xf]
    %v48 = vld [vmem:[%s2] sm:$0x7]
    %v50 = vperm.slane %v48, 0
    %v51 = vperm.slane %v48, 1
    %v52 = vperm.slane %v48, 2
    %v88 = vunpack.c.l.b16 %v16
    %v89 = vunpack.c.h.b16 %v16
    %v90 = vunpack.c.l.b16 %v17
    %v91 = vunpack.c.l.b16 %v18
    %v92 = vunpack.c.h.b16 %v18
    %v93 = vunpack.c.l.b16 %v19
    %v94 = vunpack.c.l.b16 %v20
    %v95 = vunpack.c.h.b16 %v20
    %v96 = vunpack.c.l.b16 %v21
    %v97 = vunpack.c.l.b16 %v22
    %v98 = vunpack.c.h.b16 %v22
    %v99 = vunpack.c.l.b16 %v23
    %v100 = vunpack.c.l.b16 %v24
    %v101 = vunpack.c.h.b16 %v24
    %v102 = vunpack.c.l.b16 %v25
    %v103 = vunpack.c.l.b16 %v26
    %v104 = vunpack.c.h.b16 %v26
    %v105 = vunpack.c.l.b16 %v27
    %v106 = vunpack.c.l.b16 %v28
    %v107 = vunpack.c.h.b16 %v28
    %v108 = vunpack.c.l.b16 %v29
    %v109 = vunpack.c.l.b16 %v30
    %v110 = vunpack.c.h.b16 %v30
    %v111 = vunpack.c.l.b16 %v31
    %v112 = vunpack.c.l.b16 %v32
    %v113 = vunpack.c.h.b16 %v32
    %v114 = vunpack.c.l.b16 %v33
    %v115 = vunpack.c.l.b16 %v34
    %v116 = vunpack.c.h.b16 %v34
    %v117 = vunpack.c.l.b16 %v35
    %v118 = vunpack.c.l.b16 %v36
    %v119 = vunpack.c.h.b16 %v36
    %v120 = vunpack.c.l.b16 %v37
    %v121 = vunpack.c.l.b16 %v38
    %v122 = vunpack.c.h.b16 %v38
    %v123 = vunpack.c.l.b16 %v39
    %v124 = vunpack.c.l.b16 %v40
    %v125 = vunpack.c.h.b16 %v40
    %v126 = vunpack.c.l.b16 %v41
    %v127 = vunpack.c.l.b16 %v42
    %v128 = vunpack.c.h.b16 %v42
    %v129 = vunpack.c.l.b16 %v43
    %v130 = vunpack.c.l.b16 %v44
    %v131 = vunpack.c.h.b16 %v44
    %v132 = vunpack.c.l.b16 %v45
    %v133 = vunpack.c.l.b16 %v46
    %v134 = vunpack.c.h.b16 %v46
    %v135 = vunpack.c.l.b16 %v47
    %v136 = vpack.c.b16 %v91, %v88
    %v137 = vpack.c.b16 %v92, %v89
    %v138 = vpack.c.b16 %v93, %v90
    %v139 = vpack.c.b16 %v97, %v94
    %v140 = vpack.c.b16 %v98, %v95
    %v141 = vpack.c.b16 %v99, %v96
    %v142 = vpack.c.b16 %v103, %v100
    %v143 = vpack.c.b16 %v104, %v101
    %v144 = vpack.c.b16 %v105, %v102
    %v145 = vpack.c.b16 %v109, %v106
    %v146 = vpack.c.b16 %v110, %v107
    %v147 = vpack.c.b16 %v111, %v108
    %v148 = vpack.c.b16 %v115, %v112
    %v149 = vpack.c.b16 %v116, %v113
    %v150 = vpack.c.b16 %v117, %v114
    %v151 = vpack.c.b16 %v121, %v118
    %v152 = vpack.c.b16 %v122, %v119
    %v153 = vpack.c.b16 %v123, %v120
    %v154 = vpack.c.b16 %v127, %v124
    %v155 = vpack.c.b16 %v128, %v125
    %v156 = vpack.c.b16 %v129, %v126
    %v157 = vpack.c.b16 %v133, %v130
    %v158 = vpack.c.b16 %v134, %v131
    %v159 = vpack.c.b16 %v135, %v132
    %184 = vmatpush.bf16.msra.mxu0 %v157
    %185 = vmatpush.bf16.msra.mxu0 %v154
    %186 = vmatpush.bf16.msra.mxu0 %v151
    %187 = vmatpush.bf16.msra.mxu0 %v148
    %188 = vmatpush.bf16.msra.mxu0 %v145
    %189 = vmatpush.bf16.msra.mxu0 %v142
    %190 = vmatpush.bf16.msra.mxu0 %v139
    %191 = vmatpush.bf16.msra.mxu0 %v136
    %192 = vmatmul.bf16.gmra.mxu0 %v15
    %v193 = vpop.f32.mrf.mxu0
    %v194 = vadd.f32 %v50, %v193
    %v195 = vpop.f32.mrf.mxu0
    %196 = vdwg.mxu0
    %197 = vmatpush.bf16.msra.mxu0 %v158
    %198 = vmatpush.bf16.msra.mxu0 %v155
    %199 = vmatpush.bf16.msra.mxu0 %v152
    %200 = vmatpush.bf16.msra.mxu0 %v149
    %201 = vmatpush.bf16.msra.mxu0 %v146
    %202 = vmatpush.bf16.msra.mxu0 %v143
    %203 = vmatpush.bf16.msra.mxu0 %v140
    %204 = vmatpush.bf16.msra.mxu0 %v137
    %205 = vmatmul.bf16.gmra.mxu0 %v15
    %v206 = vpop.f32.mrf.mxu0
    %v207 = vadd.f32 %v51, %v206
    %v208 = vpop.f32.mrf.mxu0
    %209 = vdwg.mxu0
    %210 = vmatpush.bf16.msra.mxu0 %v159
    %211 = vmatpush.bf16.msra.mxu0 %v156
    %212 = vmatpush.bf16.msra.mxu0 %v153
    %213 = vmatpush.bf16.msra.mxu0 %v150
    %214 = vmatpush.bf16.msra.mxu0 %v147
    %215 = vmatpush.bf16.msra.mxu0 %v144
    %216 = vmatpush.bf16.msra.mxu0 %v141
    %217 = vmatpush.bf16.msra.mxu0 %v138
    %218 = vmatmul.bf16.gmra.mxu0 %v15
    %v219 = vpop.f32.mrf.mxu0
    %v220 = vadd.f32 %v52, %v219
    %v221 = vpop.f32.mrf.mxu0
    %222 = vdwg.mxu0
    %v223 = vpack.c.bf16 %v207, %v194
    %v224 = vpack.c.bf16 %v220, %v220
    %225 = vst [vmem:[#allocation2] sm:$0xff] %v223
    %226 = vst [vmem:[#allocation2 + $0x8] sm:$0xf] %v224
    // Predicated region
    $region14: #{decoder_step_pallas.3} parent=1 // pred_check
      _
    $region15: #{decoder_step_pallas.3} parent=1 // pred_check_branch
      %228 = sbr.rel (0) target = $region17
    $region16: #{decoder_step_pallas.3} parent=1 // pred_region
      %230 = vsyncadd [#allocation3], 0
      %s232 = sshll.u32 [#allocation2], 4
      %s233 = int_to_ptr.vmem [resolvable:$true] %s232
      %s234 = sshll.u32 %s3, 4
      %s235 = int_to_ptr.hbm [resolvable:$true] %s234
      %237 = dma.vmem_to_hbm [thread:$0]  %s233, 192, %s235, [#allocation3]
    $region17: #{decoder_step_pallas.3} parent=1 // pred_fallthru
      _
    // Predicated region
    $region18: #{decoder_step_pallas.3} parent=1 // pred_check
      _
    $region19: #{decoder_step_pallas.3} parent=1 // pred_check_branch
      %239 = sbr.rel (0) target = $region21
    $region20: #{decoder_step_pallas.3} parent=1 // pred_region
      %241 = dma.done [#allocation3], 192
    $region21: #{decoder_step_pallas.3} parent=1 // pred_fallthru
      _
    %242 = vsyncpa [#allocation3], 1

// kernel: decoder_step_pallas.2
$region0: #{decoder_step_pallas.2}
  #allocation0 [shape = 'u32[]', space=smem, size = 0x4, offset = 0x4, fixed_abs, tag = 'smem constant byte address 0x4 - core index']
  #allocation1 [shape = 'u32[72,128]{1,0:T(1,128)}', space=vmem, size = 0x9000, scoped, tag = 'internal scratch']
  %s0 = inlined_call_operand.hbm [shape: bf16[8,256], index: 0, kind: input, shape index: {}]
  %s1 = inlined_call_operand.hbm [shape: f32[8,128], index: 1, kind: input, shape index: {}]
  %s2 = inlined_call_operand.hbm [shape: bf16[256,512], index: 2, kind: input, shape index: {}]
  %s3 = inlined_call_operand.hbm [shape: f32[1,512], index: 3, kind: input, shape index: {}]
  %s4 = inlined_call_operand.hbm [shape: f32[8,128], index: 4, kind: output, shape index: {0}]
  %s5 = inlined_call_operand.vmem [shape: bf16[8,128], index: 5, kind: output, shape index: {1}]
  %6 = xla_tuple %s4, %s5
  %s7 = sld [smem:[#allocation0]]
  $region50: #{decoder_step_pallas.2} parent=0
    _
  %s9 = ssub.s32 1, %s7
  %s10 = scalar_select 0, %s9, %s7
  $region1: #{decoder_step_pallas.2} parent=0
    #allocation2 [shape = 'u8[4096]{0}', space=vmem, size = 0x1000, scoped, tag = 'input window, operand 0, single buffered']
    #allocation3 [shape = 's32[1]{0}', space=sflag, size = 0x4, scoped, tag = 'scoped memory for decoder_step_pallas.2']
    #allocation4 [shape = 's32[1]{0}', space=sflag, size = 0x4, scoped, tag = 'scoped memory for decoder_step_pallas.2']
    #allocation5 [shape = 'u8[4096]{0}', space=vmem, size = 0x1000, scoped, tag = 'input window, operand 1, single buffered']
    #allocation6 [shape = 's32[1]{0}', space=sflag, size = 0x4, scoped, tag = 'scoped memory for decoder_step_pallas.2']
    #allocation7 [shape = 'u8[262144]{0}', space=vmem, size = 0x40000, scoped, tag = 'input window, operand 2, single buffered']
    #allocation8 [shape = 'u8[2048]{0}', space=vmem, size = 0x800, scoped, tag = 'input window, operand 3, single buffered']
    #allocation9 [shape = 's32[1]{0}', space=sflag, size = 0x4, scoped, tag = 'scoped memory for decoder_step_pallas.2']
    #allocation10 [shape = 'u8[4096]{0}', space=vmem, size = 0x1000, scoped, tag = 'output window, operand 0, single buffered']
    %11 = vsyncpa [#allocation3], 0
    %12 = vsyncpa [#allocation6], 0
    %13 = vsyncpa [#allocation9], 0
    %14 = vsyncpa [#allocation4], 0
    // Predicated region
    $region2: #{decoder_step_pallas.2} parent=1 // pred_check
      _
    $region3: #{decoder_step_pallas.2} parent=1 // pred_check_branch
      %16 = sbr.rel (0) target = $region5
    $region4: #{decoder_step_pallas.2} parent=1 // pred_region
      %18 = vsyncadd [#allocation3], 0
      %s20 = sshll.u32 %s0, 4
      %s21 = int_to_ptr.hbm [resolvable:$true] %s20
      %s22 = sshll.u32 [#allocation2], 4
      %s23 = int_to_ptr.vmem [resolvable:$true] %s22
      %25 = dma.hbm_to_vmem [thread:$0]  %s21, 128, %s23, [#allocation3]
    $region5: #{decoder_step_pallas.2} parent=1 // pred_fallthru
      _
    // Predicated region
    $region6: #{decoder_step_pallas.2} parent=1 // pred_check
      _
    $region7: #{decoder_step_pallas.2} parent=1 // pred_check_branch
      %27 = sbr.rel (0) target = $region9
    $region8: #{decoder_step_pallas.2} parent=1 // pred_region
      %29 = vsyncadd [#allocation6], 0
      %s31 = sshll.u32 %s1, 4
      %s32 = int_to_ptr.hbm [resolvable:$true] %s31
      %s33 = sshll.u32 [#allocation5], 4
      %s34 = int_to_ptr.vmem [resolvable:$true] %s33
      %36 = dma.hbm_to_vmem [thread:$0]  %s32, 128, %s34, [#allocation6]
    $region9: #{decoder_step_pallas.2} parent=1 // pred_fallthru
      _
    // Predicated region
    $region10: #{decoder_step_pallas.2} parent=1 // pred_check
      _
    $region11: #{decoder_step_pallas.2} parent=1 // pred_check_branch
      %38 = sbr.rel (0) target = $region13
    $region12: #{decoder_step_pallas.2} parent=1 // pred_region
      %40 = vsyncadd [#allocation6], 0
      %s41 = sshll.u32 %s2, 4
      %s42 = int_to_ptr.hbm [resolvable:$true] %s41
      %s43 = sshll.u32 [#allocation7], 4
      %s44 = int_to_ptr.vmem [resolvable:$true] %s43
      %49 = dma.hbm_to_vmem [thread:$0]  %s42, 8192, %s44, [#allocation6], 256, 256, 16
    $region13: #{decoder_step_pallas.2} parent=1 // pred_fallthru
      _
    // Predicated region
    $region14: #{decoder_step_pallas.2} parent=1 // pred_check
      _
    $region15: #{decoder_step_pallas.2} parent=1 // pred_check_branch
      %51 = sbr.rel (0) target = $region17
    $region16: #{decoder_step_pallas.2} parent=1 // pred_region
      %53 = vsyncadd [#allocation9], 0
      %s55 = sshll.u32 %s3, 4
      %s56 = int_to_ptr.hbm [resolvable:$true] %s55
      %s57 = sshll.u32 [#allocation8], 4
      %s58 = int_to_ptr.vmem [resolvable:$true] %s57
      %60 = dma.hbm_to_vmem [thread:$0]  %s56, 64, %s58, [#allocation9]
    $region17: #{decoder_step_pallas.2} parent=1 // pred_fallthru
      _
    // Predicated region
    $region18: #{decoder_step_pallas.2} parent=1 // pred_check
      _
    $region19: #{decoder_step_pallas.2} parent=1 // pred_check_branch
      %62 = sbr.rel (0) target = $region21
    $region20: #{decoder_step_pallas.2} parent=1 // pred_region
      %64 = dma.done [#allocation3], 128
    $region21: #{decoder_step_pallas.2} parent=1 // pred_fallthru
      _
    // Predicated region
    $region22: #{decoder_step_pallas.2} parent=1 // pred_check
      _
    $region23: #{decoder_step_pallas.2} parent=1 // pred_check_branch
      %66 = sbr.rel (0) target = $region25
    $region24: #{decoder_step_pallas.2} parent=1 // pred_region
      %68 = dma.done [#allocation6], 128
    $region25: #{decoder_step_pallas.2} parent=1 // pred_fallthru
      _
    // Predicated region
    $region26: #{decoder_step_pallas.2} parent=1 // pred_check
      _
    $region27: #{decoder_step_pallas.2} parent=1 // pred_check_branch
      %70 = sbr.rel (0) target = $region29
    $region28: #{decoder_step_pallas.2} parent=1 // pred_region
      %72 = dma.done [#allocation6], 8192
    $region29: #{decoder_step_pallas.2} parent=1 // pred_fallthru
      _
    // Predicated region
    $region30: #{decoder_step_pallas.2} parent=1 // pred_check
      _
    $region31: #{decoder_step_pallas.2} parent=1 // pred_check_branch
      %74 = sbr.rel (0) target = $region33
    $region32: #{decoder_step_pallas.2} parent=1 // pred_region
      %76 = dma.done [#allocation9], 64
    $region33: #{decoder_step_pallas.2} parent=1 // pred_fallthru
      _
    %v77 = vld [vmem:[#allocation2] sm:$0xff]
    %v78 = vld [vmem:[#allocation7] sm:$0xff]
    %v79 = vld [vmem:[#allocation7 + $0x8] sm:$0xff]
    %v80 = vld [vmem:[#allocation7 + $0x10] sm:$0xff]
    %v81 = vld [vmem:[#allocation7 + $0x18] sm:$0xff]
    %v82 = vld [vmem:[#allocation7 + $0x20] sm:$0xff]
    %v83 = vld [vmem:[#allocation7 + $0x28] sm:$0xff]
    %v84 = vld [vmem:[#allocation7 + $0x30] sm:$0xff]
    %v85 = vld [vmem:[#allocation7 + $0x38] sm:$0xff]
    %v86 = vld [vmem:[#allocation7 + $0x40] sm:$0xff]
    %v87 = vld [vmem:[#allocation7 + $0x48] sm:$0xff]
    %v88 = vld [vmem:[#allocation7 + $0x50] sm:$0xff]
    %v89 = vld [vmem:[#allocation7 + $0x58] sm:$0xff]
    %v90 = vld [vmem:[#allocation7 + $0x60] sm:$0xff]
    %v91 = vld [vmem:[#allocation7 + $0x68] sm:$0xff]
    %v92 = vld [vmem:[#allocation7 + $0x70] sm:$0xff]
    %v93 = vld [vmem:[#allocation7 + $0x78] sm:$0xff]
    %v94 = vld [vmem:[#allocation7 + $0x80] sm:$0xff]
    %v95 = vld [vmem:[#allocation7 + $0x88] sm:$0xff]
    %v96 = vld [vmem:[#allocation7 + $0x90] sm:$0xff]
    %v97 = vld [vmem:[#allocation7 + $0x98] sm:$0xff]
    %v98 = vld [vmem:[#allocation7 + $0xa0] sm:$0xff]
    %v99 = vld [vmem:[#allocation7 + $0xa8] sm:$0xff]
    %v100 = vld [vmem:[#allocation7 + $0xb0] sm:$0xff]
    %v101 = vld [vmem:[#allocation7 + $0xb8] sm:$0xff]
    %v102 = vld [vmem:[#allocation7 + $0xc0] sm:$0xff]
    %v103 = vld [vmem:[#allocation7 + $0xc8] sm:$0xff]
    %v104 = vld [vmem:[#allocation7 + $0xd0] sm:$0xff]
    %v105 = vld [vmem:[#allocation7 + $0xd8] sm:$0xff]
    %v106 = vld [vmem:[#allocation7 + $0xe0] sm:$0xff]
    %v107 = vld [vmem:[#allocation7 + $0xe8] sm:$0xff]
    %v108 = vld [vmem:[#allocation7 + $0xf0] sm:$0xff]
    %v109 = vld [vmem:[#allocation7 + $0xf8] sm:$0xff]
    %v110 = vld [vmem:[#allocation7 + $0x100] sm:$0xff]
    %v111 = vld [vmem:[#allocation7 + $0x108] sm:$0xff]
    %v112 = vld [vmem:[#allocation7 + $0x110] sm:$0xff]
    %v113 = vld [vmem:[#allocation7 + $0x118] sm:$0xff]
    %v114 = vld [vmem:[#allocation7 + $0x120] sm:$0xff]
    %v115 = vld [vmem:[#allocation7 + $0x128] sm:$0xff]
    %v116 = vld [vmem:[#allocation7 + $0x130] sm:$0xff]
    %v117 = vld [vmem:[#allocation7 + $0x138] sm:$0xff]
    %v118 = vld [vmem:[#allocation7 + $0x140] sm:$0xff]
    %v119 = vld [vmem:[#allocation7 + $0x148] sm:$0xff]
    %v120 = vld [vmem:[#allocation7 + $0x150] sm:$0xff]
    %v121 = vld [vmem:[#allocation7 + $0x158] sm:$0xff]
    %v122 = vld [vmem:[#allocation7 + $0x160] sm:$0xff]
    %v123 = vld [vmem:[#allocation7 + $0x168] sm:$0xff]
    %v124 = vld [vmem:[#allocation7 + $0x170] sm:$0xff]
    %v125 = vld [vmem:[#allocation7 + $0x178] sm:$0xff]
    %v126 = vld [vmem:[#allocation7 + $0x180] sm:$0xff]
    %v127 = vld [vmem:[#allocation7 + $0x188] sm:$0xff]
    %v128 = vld [vmem:[#allocation7 + $0x190] sm:$0xff]
    %v129 = vld [vmem:[#allocation7 + $0x198] sm:$0xff]
    %v130 = vld [vmem:[#allocation7 + $0x1a0] sm:$0xff]
    %v131 = vld [vmem:[#allocation7 + $0x1a8] sm:$0xff]
    %v132 = vld [vmem:[#allocation7 + $0x1b0] sm:$0xff]
    %v133 = vld [vmem:[#allocation7 + $0x1b8] sm:$0xff]
    %v134 = vld [vmem:[#allocation7 + $0x1c0] sm:$0xff]
    %v135 = vld [vmem:[#allocation7 + $0x1c8] sm:$0xff]
    %v136 = vld [vmem:[#allocation7 + $0x1d0] sm:$0xff]
    %v137 = vld [vmem:[#allocation7 + $0x1d8] sm:$0xff]
    %v138 = vld [vmem:[#allocation7 + $0x1e0] sm:$0xff]
    %v139 = vld [vmem:[#allocation7 + $0x1e8] sm:$0xff]
    %v140 = vld [vmem:[#allocation7 + $0x1f0] sm:$0xff]
    %v141 = vld [vmem:[#allocation7 + $0x1f8] sm:$0xff]
    %v142 = vld [vmem:[#allocation8] sm:$0xf]
    %v144 = vperm.slane %v142, 0
    %v145 = vperm.slane %v142, 1
    %v146 = vperm.slane %v142, 2
    %v147 = vperm.slane %v142, 3
    %v153 = vunpack.c.l.b16 %v77
    %v154 = vunpack.c.h.b16 %v77
    %v155 = vpack.c.b16 %v153, %v153
    %v156 = vpack.c.b16 %v154, %v154
    %v223 = vunpack.c.l.b16 %v78
    %v224 = vunpack.c.h.b16 %v78
    %v225 = vunpack.c.l.b16 %v79
    %v226 = vunpack.c.h.b16 %v79
    %v227 = vunpack.c.l.b16 %v80
    %v228 = vunpack.c.h.b16 %v80
    %v229 = vunpack.c.l.b16 %v81
    %v230 = vunpack.c.h.b16 %v81
    %v231 = vunpack.c.l.b16 %v82
    %v232 = vunpack.c.h.b16 %v82
    %v233 = vunpack.c.l.b16 %v83
    %v234 = vunpack.c.h.b16 %v83
    %v235 = vunpack.c.l.b16 %v84
    %v236 = vunpack.c.h.b16 %v84
    %v237 = vunpack.c.l.b16 %v85
    %v238 = vunpack.c.h.b16 %v85
    %v239 = vunpack.c.l.b16 %v86
    %v240 = vunpack.c.h.b16 %v86
    %v241 = vunpack.c.l.b16 %v87
    %v242 = vunpack.c.h.b16 %v87
    %v243 = vunpack.c.l.b16 %v88
    %v244 = vunpack.c.h.b16 %v88
    %v245 = vunpack.c.l.b16 %v89
    %v246 = vunpack.c.h.b16 %v89
    %v247 = vunpack.c.l.b16 %v90
    %v248 = vunpack.c.h.b16 %v90
    %v249 = vunpack.c.l.b16 %v91
    %v250 = vunpack.c.h.b16 %v91
    %v251 = vunpack.c.l.b16 %v92
    %v252 = vunpack.c.h.b16 %v92
    %v253 = vunpack.c.l.b16 %v93
    %v254 = vunpack.c.h.b16 %v93
    %v255 = vunpack.c.l.b16 %v94
    %v256 = vunpack.c.h.b16 %v94
    %v257 = vunpack.c.l.b16 %v95
    %v258 = vunpack.c.h.b16 %v95
    %v259 = vunpack.c.l.b16 %v96
    %v260 = vunpack.c.h.b16 %v96
    %v261 = vunpack.c.l.b16 %v97
    %v262 = vunpack.c.h.b16 %v97
    %v263 = vunpack.c.l.b16 %v98
    %v264 = vunpack.c.h.b16 %v98
    %v265 = vunpack.c.l.b16 %v99
    %v266 = vunpack.c.h.b16 %v99
    %v267 = vunpack.c.l.b16 %v100
    %v268 = vunpack.c.h.b16 %v100
    %v269 = vunpack.c.l.b16 %v101
    %v270 = vunpack.c.h.b16 %v101
    %v271 = vunpack.c.l.b16 %v102
    %v272 = vunpack.c.h.b16 %v102
    %v273 = vunpack.c.l.b16 %v103
    %v274 = vunpack.c.h.b16 %v103
    %v275 = vunpack.c.l.b16 %v104
    %v276 = vunpack.c.h.b16 %v104
    %v277 = vunpack.c.l.b16 %v105
    %v278 = vunpack.c.h.b16 %v105
    %v279 = vunpack.c.l.b16 %v106
    %v280 = vunpack.c.h.b16 %v106
    %v281 = vunpack.c.l.b16 %v107
    %v282 = vunpack.c.h.b16 %v107
    %v283 = vunpack.c.l.b16 %v108
    %v284 = vunpack.c.h.b16 %v108
    %v285 = vunpack.c.l.b16 %v109
    %v286 = vunpack.c.h.b16 %v109
    %v287 = vunpack.c.l.b16 %v110
    %v288 = vunpack.c.h.b16 %v110
    %v289 = vunpack.c.l.b16 %v111
    %v290 = vunpack.c.h.b16 %v111
    %v291 = vunpack.c.l.b16 %v112
    %v292 = vunpack.c.h.b16 %v112
    %v293 = vunpack.c.l.b16 %v113
    %v294 = vunpack.c.h.b16 %v113
    %v295 = vunpack.c.l.b16 %v114
    %v296 = vunpack.c.h.b16 %v114
    %v297 = vunpack.c.l.b16 %v115
    %v298 = vunpack.c.h.b16 %v115
    %v299 = vunpack.c.l.b16 %v116
    %v300 = vunpack.c.h.b16 %v116
    %v301 = vunpack.c.l.b16 %v117
    %v302 = vunpack.c.h.b16 %v117
    %v303 = vunpack.c.l.b16 %v118
    %v304 = vunpack.c.h.b16 %v118
    %v305 = vunpack.c.l.b16 %v119
    %v306 = vunpack.c.h.b16 %v119
    %v307 = vunpack.c.l.b16 %v120
    %v308 = vunpack.c.h.b16 %v120
    %v309 = vunpack.c.l.b16 %v121
    %v310 = vunpack.c.h.b16 %v121
    %v311 = vunpack.c.l.b16 %v122
    %v312 = vunpack.c.h.b16 %v122
    %v313 = vunpack.c.l.b16 %v123
    %v314 = vunpack.c.h.b16 %v123
    %v315 = vunpack.c.l.b16 %v124
    %v316 = vunpack.c.h.b16 %v124
    %v317 = vunpack.c.l.b16 %v125
    %v318 = vunpack.c.h.b16 %v125
    %v319 = vunpack.c.l.b16 %v126
    %v320 = vunpack.c.h.b16 %v126
    %v321 = vunpack.c.l.b16 %v127
    %v322 = vunpack.c.h.b16 %v127
    %v323 = vunpack.c.l.b16 %v128
    %v324 = vunpack.c.h.b16 %v128
    %v325 = vunpack.c.l.b16 %v129
    %v326 = vunpack.c.h.b16 %v129
    %v327 = vunpack.c.l.b16 %v130
    %v328 = vunpack.c.h.b16 %v130
    %v329 = vunpack.c.l.b16 %v131
    %v330 = vunpack.c.h.b16 %v131
    %v331 = vunpack.c.l.b16 %v132
    %v332 = vunpack.c.h.b16 %v132
    %v333 = vunpack.c.l.b16 %v133
    %v334 = vunpack.c.h.b16 %v133
    %v335 = vunpack.c.l.b16 %v134
    %v336 = vunpack.c.h.b16 %v134
    %v337 = vunpack.c.l.b16 %v135
    %v338 = vunpack.c.h.b16 %v135
    %v339 = vunpack.c.l.b16 %v136
    %v340 = vunpack.c.h.b16 %v136
    %v341 = vunpack.c.l.b16 %v137
    %v342 = vunpack.c.h.b16 %v137
    %v343 = vunpack.c.l.b16 %v138
    %v344 = vunpack.c.h.b16 %v138
    %v345 = vunpack.c.l.b16 %v139
    %v346 = vunpack.c.h.b16 %v139
    %v347 = vunpack.c.l.b16 %v140
    %v348 = vunpack.c.h.b16 %v140
    %v349 = vunpack.c.l.b16 %v141
    %v350 = vunpack.c.h.b16 %v141
    %v351 = vpack.c.b16 %v227, %v223
    %v352 = vpack.c.b16 %v228, %v224
    %v353 = vpack.c.b16 %v229, %v225
    %v354 = vpack.c.b16 %v230, %v226
    %v355 = vpack.c.b16 %v235, %v231
    %v356 = vpack.c.b16 %v236, %v232
    %v357 = vpack.c.b16 %v237, %v233
    %v358 = vpack.c.b16 %v238, %v234
    %v359 = vpack.c.b16 %v243, %v239
    %v360 = vpack.c.b16 %v244, %v240
    %v361 = vpack.c.b16 %v245, %v241
    %v362 = vpack.c.b16 %v246, %v242
    %v363 = vpack.c.b16 %v251, %v247
    %v364 = vpack.c.b16 %v252, %v248
    %v365 = vpack.c.b16 %v253, %v249
    %v366 = vpack.c.b16 %v254, %v250
    %v367 = vpack.c.b16 %v259, %v255
    %v368 = vpack.c.b16 %v260, %v256
    %v369 = vpack.c.b16 %v261, %v257
    %v370 = vpack.c.b16 %v262, %v258
    %v371 = vpack.c.b16 %v267, %v263
    %v372 = vpack.c.b16 %v268, %v264
    %v373 = vpack.c.b16 %v269, %v265
    %v374 = vpack.c.b16 %v270, %v266
    %v375 = vpack.c.b16 %v275, %v271
    %v376 = vpack.c.b16 %v276, %v272
    %v377 = vpack.c.b16 %v277, %v273
    %v378 = vpack.c.b16 %v278, %v274
    %v379 = vpack.c.b16 %v283, %v279
    %v380 = vpack.c.b16 %v284, %v280
    %v381 = vpack.c.b16 %v285, %v281
    %v382 = vpack.c.b16 %v286, %v282
    %v383 = vpack.c.b16 %v291, %v287
    %v384 = vpack.c.b16 %v292, %v288
    %v385 = vpack.c.b16 %v293, %v289
    %v386 = vpack.c.b16 %v294, %v290
    %v387 = vpack.c.b16 %v299, %v295
    %v388 = vpack.c.b16 %v300, %v296
    %v389 = vpack.c.b16 %v301, %v297
    %v390 = vpack.c.b16 %v302, %v298
    %v391 = vpack.c.b16 %v307, %v303
    %v392 = vpack.c.b16 %v308, %v304
    %v393 = vpack.c.b16 %v309, %v305
    %v394 = vpack.c.b16 %v310, %v306
    %v395 = vpack.c.b16 %v315, %v311
    %v396 = vpack.c.b16 %v316, %v312
    %v397 = vpack.c.b16 %v317, %v313
    %v398 = vpack.c.b16 %v318, %v314
    %v399 = vpack.c.b16 %v323, %v319
    %v400 = vpack.c.b16 %v324, %v320
    %v401 = vpack.c.b16 %v325, %v321
    %v402 = vpack.c.b16 %v326, %v322
    %v403 = vpack.c.b16 %v331, %v327
    %v404 = vpack.c.b16 %v332, %v328
    %v405 = vpack.c.b16 %v333, %v329
    %v406 = vpack.c.b16 %v334, %v330
    %v407 = vpack.c.b16 %v339, %v335
    %v408 = vpack.c.b16 %v340, %v336
    %v409 = vpack.c.b16 %v341, %v337
    %v410 = vpack.c.b16 %v342, %v338
    %v411 = vpack.c.b16 %v347, %v343
    %v412 = vpack.c.b16 %v348, %v344
    %v413 = vpack.c.b16 %v349, %v345
    %v414 = vpack.c.b16 %v350, %v346
    %479 = vmatpush.bf16.msra.mxu0 %v379
    %480 = vmatpush.bf16.msra.mxu0 %v375
    %481 = vmatpush.bf16.msra.mxu0 %v371
    %482 = vmatpush.bf16.msra.mxu0 %v367
    %483 = vmatpush.bf16.msra.mxu0 %v363
    %484 = vmatpush.bf16.msra.mxu0 %v359
    %485 = vmatpush.bf16.msra.mxu0 %v355
    %486 = vmatpush.bf16.msra.mxu0 %v351
    %487 = vmatmul.bf16.gmra.mxu0 %v155
    %v488 = vpop.f32.mrf.mxu0
    %v489 = vadd.f32 %v144, %v488
    %v490 = vpop.f32.mrf.mxu0
    %491 = vdwg.mxu0
    %492 = vmatpush.bf16.msra.mxu0 %v411
    %493 = vmatpush.bf16.msra.mxu0 %v407
    %494 = vmatpush.bf16.msra.mxu0 %v403
    %495 = vmatpush.bf16.msra.mxu0 %v399
    %496 = vmatpush.bf16.msra.mxu0 %v395
    %497 = vmatpush.bf16.msra.mxu0 %v391
    %498 = vmatpush.bf16.msra.mxu0 %v387
    %499 = vmatpush.bf16.msra.mxu0 %v383
    %500 = vmatmul.bf16.gmra.mxu0 %v156
    %v501 = vpop.f32.mrf.mxu0
    %v502 = vadd.f32 %v489, %v501
    %v503 = vpop.f32.mrf.mxu0
    %504 = vdwg.mxu0
    %505 = vmatpush.bf16.msra.mxu0 %v380
    %506 = vmatpush.bf16.msra.mxu0 %v376
    %507 = vmatpush.bf16.msra.mxu0 %v372
    %508 = vmatpush.bf16.msra.mxu0 %v368
    %509 = vmatpush.bf16.msra.mxu0 %v364
    %510 = vmatpush.bf16.msra.mxu0 %v360
    %511 = vmatpush.bf16.msra.mxu0 %v356
    %512 = vmatpush.bf16.msra.mxu0 %v352
    %513 = vmatmul.bf16.gmra.mxu0 %v155
    %v514 = vpop.f32.mrf.mxu0
    %v515 = vadd.f32 %v145, %v514
    %v516 = vpop.f32.mrf.mxu0
    %517 = vdwg.mxu0
    %518 = vmatpush.bf16.msra.mxu0 %v412
    %519 = vmatpush.bf16.msra.mxu0 %v408
    %520 = vmatpush.bf16.msra.mxu0 %v404
    %521 = vmatpush.bf16.msra.mxu0 %v400
    %522 = vmatpush.bf16.msra.mxu0 %v396
    %523 = vmatpush.bf16.msra.mxu0 %v392
    %524 = vmatpush.bf16.msra.mxu0 %v388
    %525 = vmatpush.bf16.msra.mxu0 %v384
    %526 = vmatmul.bf16.gmra.mxu0 %v156
    %v527 = vpop.f32.mrf.mxu0
    %v528 = vadd.f32 %v515, %v527
    %v529 = vpop.f32.mrf.mxu0
    %530 = vdwg.mxu0
    %531 = vmatpush.bf16.msra.mxu0 %v381
    %532 = vmatpush.bf16.msra.mxu0 %v377
    %533 = vmatpush.bf16.msra.mxu0 %v373
    %534 = vmatpush.bf16.msra.mxu0 %v369
    %535 = vmatpush.bf16.msra.mxu0 %v365
    %536 = vmatpush.bf16.msra.mxu0 %v361
    %537 = vmatpush.bf16.msra.mxu0 %v357
    %538 = vmatpush.bf16.msra.mxu0 %v353
    %539 = vmatmul.bf16.gmra.mxu0 %v155
    %v540 = vpop.f32.mrf.mxu0
    %v541 = vadd.f32 %v146, %v540
    %v542 = vpop.f32.mrf.mxu0
    %543 = vdwg.mxu0
    %544 = vmatpush.bf16.msra.mxu0 %v413
    %545 = vmatpush.bf16.msra.mxu0 %v409
    %546 = vmatpush.bf16.msra.mxu0 %v405
    %547 = vmatpush.bf16.msra.mxu0 %v401
    %548 = vmatpush.bf16.msra.mxu0 %v397
    %549 = vmatpush.bf16.msra.mxu0 %v393
    %550 = vmatpush.bf16.msra.mxu0 %v389
    %551 = vmatpush.bf16.msra.mxu0 %v385
    %552 = vmatmul.bf16.gmra.mxu0 %v156
    %v553 = vpop.f32.mrf.mxu0
    %v554 = vadd.f32 %v541, %v553
    %v555 = vpop.f32.mrf.mxu0
    %556 = vdwg.mxu0
    %557 = vmatpush.bf16.msra.mxu0 %v382
    %558 = vmatpush.bf16.msra.mxu0 %v378
    %559 = vmatpush.bf16.msra.mxu0 %v374
    %560 = vmatpush.bf16.msra.mxu0 %v370
    %561 = vmatpush.bf16.msra.mxu0 %v366
    %562 = vmatpush.bf16.msra.mxu0 %v362
    %563 = vmatpush.bf16.msra.mxu0 %v358
    %564 = vmatpush.bf16.msra.mxu0 %v354
    %565 = vmatmul.bf16.gmra.mxu0 %v155
    %v566 = vpop.f32.mrf.mxu0
    %v567 = vadd.f32 %v147, %v566
    %v568 = vpop.f32.mrf.mxu0
    %569 = vdwg.mxu0
    %570 = vmatpush.bf16.msra.mxu0 %v414
    %571 = vmatpush.bf16.msra.mxu0 %v410
    %572 = vmatpush.bf16.msra.mxu0 %v406
    %573 = vmatpush.bf16.msra.mxu0 %v402
    %574 = vmatpush.bf16.msra.mxu0 %v398
    %575 = vmatpush.bf16.msra.mxu0 %v394
    %576 = vmatpush.bf16.msra.mxu0 %v390
    %577 = vmatpush.bf16.msra.mxu0 %v386
    %578 = vmatmul.bf16.gmra.mxu0 %v156
    %v579 = vpop.f32.mrf.mxu0
    %v580 = vadd.f32 %v567, %v579
    %v581 = vpop.f32.mrf.mxu0
    %582 = vdwg.mxu0
    %v583 = vxor.u32 %v502, 2147483648
    %v584 = vmul.f32 %v583, 1.442695
    %v585 = vpow.pop %v584
    %v586 = vadd.f32 %v585, 1.0
    %v587 = vrcp.pop %v586
    %v588 = vmul.f32 %v586, %v587
    %v589 = vsub.f32 1.0, %v588
    %v590 = vmul.f32 %v587, %v589
    %v591 = vadd.f32 %v587, %v590
    %vm592 = vweird.f32 %v586
    %vm593 = vweird.f32 %v587
    %vm594 = vmor %vm592, %vm593
    %v595 = vsel %vm594, %v587, %v591
    %v596 = vand.u32 2147483647, %v586
    %vm597 = vcmp.eq.f32.partialorder %v596, 8.507059e+37
    %v598 = vand.u32 %v586, 2147483648
    %v599 = vor.u32 1.1754944e-38, %v598
    %v600 = vsel %vm597, %v599, %v595
    %v601 = vmul.f32 1.0, %v600
    %v602 = vxor.u32 %v528, 2147483648
    %v603 = vmul.f32 %v602, 1.442695
    %v604 = vpow.pop %v603
    %v605 = vadd.f32 %v604, 1.0
    %v606 = vrcp.pop %v605
    %v607 = vmul.f32 %v605, %v606
    %v608 = vsub.f32 1.0, %v607
    %v609 = vmul.f32 %v606, %v608
    %v610 = vadd.f32 %v606, %v609
    %vm611 = vweird.f32 %v605
    %vm612 = vweird.f32 %v606
    %vm613 = vmor %vm611, %vm612
    %v614 = vsel %vm613, %v606, %v610
    %v615 = vand.u32 2147483647, %v605
    %vm616 = vcmp.eq.f32.partialorder %v615, 8.507059e+37
    %v617 = vand.u32 %v605, 2147483648
    %v618 = vor.u32 1.1754944e-38, %v617
    %v619 = vsel %vm616, %v618, %v614
    %v620 = vmul.f32 1.0, %v619
    %v621 = vmul.f32 %v601, %v580
    %v622 = vadd.f32 %v554, %v621
    %v623 = vtanh.pop %v622
    %v624 = vsub.f32 1.0, %v620
    %v625 = vmul.f32 %v624, %v623
    %v626 = vld [vmem:[#allocation5] sm:$0xff]
    %v627 = vmul.f32 %v620, %v626
    %v628 = vadd.f32 %v625, %v627
    %629 = vst [vmem:[#allocation10] sm:$0xff] %v628
    %v630 = vpack.c.bf16 %v628, %v628
    %631 = vst [vmem:[%s5] sm:$0xf] %v630
    // Predicated region
    $region34: #{decoder_step_pallas.2} parent=1 // pred_check
      _
    $region35: #{decoder_step_pallas.2} parent=1 // pred_check_branch
      %633 = sbr.rel (0) target = $region37
    $region36: #{decoder_step_pallas.2} parent=1 // pred_region
      %635 = vsyncadd [#allocation4], 0
      %s637 = sshll.u32 [#allocation10], 4
      %s638 = int_to_ptr.vmem [resolvable:$true] %s637
      %s639 = sshll.u32 %s4, 4
      %s640 = int_to_ptr.hbm [resolvable:$true] %s639
      %642 = dma.vmem_to_hbm [thread:$0]  %s638, 128, %s640, [#allocation4]
    $region37: #{decoder_step_pallas.2} parent=1 // pred_fallthru
      _
    // Predicated region
    $region38: #{decoder_step_pallas.2} parent=1 // pred_check
      _
    $region39: #{decoder_step_pallas.2} parent=1 // pred_check_branch
      %644 = sbr.rel (0) target = $region41
    $region40: #{decoder_step_pallas.2} parent=1 // pred_region
      _
    $region41: #{decoder_step_pallas.2} parent=1 // pred_fallthru
      _
    // Predicated region
    $region42: #{decoder_step_pallas.2} parent=1 // pred_check
      _
    $region43: #{decoder_step_pallas.2} parent=1 // pred_check_branch
      %646 = sbr.rel (0) target = $region45
    $region44: #{decoder_step_pallas.2} parent=1 // pred_region
      %648 = dma.done [#allocation4], 128
    $region45: #{decoder_step_pallas.2} parent=1 // pred_fallthru
      _
    // Predicated region
    $region46: #{decoder_step_pallas.2} parent=1 // pred_check
      _
    $region47: #{decoder_step_pallas.2} parent=1 // pred_check_branch
      %650 = sbr.rel (0) target = $region49
    $region48: #{decoder_step_pallas.2} parent=1 // pred_region
      _
    $region49: #{decoder_step_pallas.2} parent=1 // pred_fallthru
      _
    %651 = vsyncpa [#allocation3], 1
    %652 = vsyncpa [#allocation6], 1
    %653 = vsyncpa [#allocation9], 1
    %654 = vsyncpa [#allocation4], 1

</llo_original>
